<compile_context>
chip_gen: v7x
topology: tpu7x:2x2x1
jax: 0.10.0
libtpu: 0.0.40
codegen_flags: <defaults>
</compile_context>

<pallas_src>
import jax
import jax.numpy as jnp
from jax.experimental import pallas as pl
from jax.experimental.pallas import tpu as pltpu


SUBLANE_TILE = 8         # sublane-dense blocks
LANE_TILE = 8192         # lane-dense blocks; 8*8192*4 B = 256 KiB per block
SMALL_B_MAX = 1 << 20    # <= 4 MiB of useful data -> single full-extent block


def wick_kernel(w_ref, t_ref, o_ref):
    # w_ref: SMEM (3,) scalars; t_ref/o_ref: VMEM tiles of x[:, -1, 1].
    w0 = w_ref[0]
    w1 = w_ref[1]
    fa = w_ref[2]
    # pow(1 + w1*t, -fa) == exp(-fa * log(1 + w1*t)); log/exp go to the EUP
    # slot, the muls/add to the VPU -> fewer VALU bundles than jnp.power.
    o_ref[...] = w0 * jnp.exp(-fa * jnp.log(1.0 + w1 * t_ref[...]))


def _wick_small(w, t):
    """B small enough to fit in one VMEM block: no pad, no grid, one call."""
    B = t.shape[0]
    out = pl.pallas_call(
        wick_kernel,
        out_shape=jax.ShapeDtypeStruct((1, B), jnp.float32),
        in_specs=[
            pl.BlockSpec(memory_space=pltpu.MemorySpace.SMEM),   # w (3,)
            pl.BlockSpec(memory_space=pltpu.MemorySpace.VMEM),   # t (1, B), full extent
        ],
        out_specs=pl.BlockSpec(memory_space=pltpu.MemorySpace.VMEM),
    )(w, t.reshape(1, B))
    return out.reshape(B)


def _wick_large(w, t):
    """Large B: (8,128)-dense 2-D tiling, 256 KiB blocks, parallel grid."""
    B = t.shape[0]
    tile = SUBLANE_TILE * LANE_TILE
    Bp = pl.cdiv(B, tile) * tile
    # TODO(synk): pad copies t once through HBM; a masked ragged last tile
    # would avoid it, at the cost of in-kernel masking.
    t2 = jnp.pad(t, (0, Bp - B)).reshape(Bp // LANE_TILE, LANE_TILE)
    rows = Bp // LANE_TILE
    out = pl.pallas_call(
        wick_kernel,
        out_shape=jax.ShapeDtypeStruct((rows, LANE_TILE), jnp.float32),
        grid=(rows // SUBLANE_TILE,),
        in_specs=[
            pl.BlockSpec(memory_space=pltpu.MemorySpace.SMEM),           # w (3,)
            pl.BlockSpec((SUBLANE_TILE, LANE_TILE), lambda i: (i, 0)),   # t tile
        ],
        out_specs=pl.BlockSpec((SUBLANE_TILE, LANE_TILE), lambda i: (i, 0)),
        compiler_params=pltpu.CompilerParams(
            dimension_semantics=("parallel",)),   # shards across TCs on v7x
    )(w, t2)
    return out.reshape(Bp)[:B]


@jax.jit
def wick_forward(x, w):
    B = x.shape[0]
    # The forward only ever uses x[:, -1, 1]: extract exactly those B scalars
    # before the kernel -> no (B, S, F) DMA, only B transcendentals.
    t = x[:, -1, 1].astype(jnp.float32)
    w = w.astype(jnp.float32)
    if B <= SMALL_B_MAX:
        flat = _wick_small(w, t)
    else:
        flat = _wick_large(w, t)
    return flat.reshape(B, 1)


if __name__ == "__main__":
    # Deterministic parameters exactly as in the module __init__.
    w = jnp.array([0.17, 0.21, 0.15], dtype=jnp.float32)

    # Small example input consistent with the forward: (B, S, F)
    B, S, F = 2, 8, 4
    key = jax.random.PRNGKey(0)
    x = jax.random.uniform(key, (B, S, F), dtype=jnp.float32)  # positive base

    out = jax.block_until_ready(wick_forward(x, w))

    # Pure-JAX reference of the same semantics.
    ref = (w[0] * jnp.power(1.0 + w[1] * x[:, :, 1], -w[2]))[:, -1:]
    assert out.shape == (B, 1)
    assert jnp.allclose(out, ref, rtol=1e-5, atol=1e-6)

    print("KERNEL_OK")
</pallas_src>

<mosaic_0001>
module attributes {stable_mosaic.version = 11 : i64} {
  func.func @wick_kernel(%arg0: memref<3xf32, #tpu.memory_space<smem>>, %arg1: memref<1x2xf32, #tpu.memory_space<vmem>>, %arg2: memref<1x2xf32, #tpu.memory_space<vmem>>) attributes {dimension_semantics = [], scalar_prefetch = 0 : i64, scratch_operands = 0 : i64, tpu.core_type = #tpu.core_type<tc>} {
    %c0 = arith.constant 0 : index
    %0 = memref.load %arg0[%c0] : memref<3xf32, #tpu.memory_space<smem>>
    %c1 = arith.constant 1 : index
    %1 = memref.load %arg0[%c1] : memref<3xf32, #tpu.memory_space<smem>>
    %c2 = arith.constant 2 : index
    %2 = memref.load %arg0[%c2] : memref<3xf32, #tpu.memory_space<smem>>
    %cst = arith.constant 0.000000e+00 : f32
    %3 = arith.subf %cst, %2 : f32
    %c0_0 = arith.constant 0 : index
    %c0_1 = arith.constant 0 : index
    %4 = vector.load %arg1[%c0_0, %c0_1] : memref<1x2xf32, #tpu.memory_space<vmem>>, vector<1x2xf32>
    %5 = vector.broadcast %1 : f32 to vector<1x2xf32>
    %6 = arith.mulf %5, %4 : vector<1x2xf32>
    %cst_2 = arith.constant 1.000000e+00 : f32
    %7 = vector.broadcast %cst_2 : f32 to vector<1x2xf32>
    %8 = arith.addf %7, %6 : vector<1x2xf32>
    %9 = math.log %8 : vector<1x2xf32>
    %10 = vector.broadcast %3 : f32 to vector<1x2xf32>
    %11 = arith.mulf %10, %9 : vector<1x2xf32>
    %12 = math.exp %11 : vector<1x2xf32>
    %13 = vector.broadcast %0 : f32 to vector<1x2xf32>
    %14 = arith.mulf %13, %12 : vector<1x2xf32>
    %c0_3 = arith.constant 0 : index
    %c0_4 = arith.constant 0 : index
    %15 = vector.load %arg2[%c0_3, %c0_4] : memref<1x2xf32, #tpu.memory_space<vmem>>, vector<1x2xf32>
    tpu.vector_store %arg2[%c0_3, %c0_4], %14 {strides = array<i32>} : memref<1x2xf32, #tpu.memory_space<vmem>>, vector<1x2xf32>,
    return
  }
}

</mosaic_0001>

<llo_original>
// kernel: wick_forward.1
$region0: #{wick_forward.1}
  #allocation0 [shape = 'u32[]', space=smem, size = 0x4, offset = 0x4, fixed_abs, tag = 'smem constant byte address 0x4 - core index']
  #allocation1 [shape = 'u32[144,128]{1,0:T(1,128)}', space=vmem, size = 0x12000, scoped, tag = 'internal scratch']
  %s0 = inlined_call_operand.vmem [shape: f32[3], index: 0, kind: input, shape index: {}]
  %s1 = inlined_call_operand.vmem [shape: f32[1,2], index: 1, kind: input, shape index: {}]
  %s2 = inlined_call_operand.hbm [shape: f32[1,2], index: 2, kind: output, shape index: {}]
  %s3 = sld [smem:[#allocation0]]
  $region22: #{wick_forward.1} parent=0
    _
  %s5 = ssub.s32 1, %s3
  %s6 = scalar_select 0, %s5, %s3
  $region1: #{wick_forward.1} parent=0
    #allocation2 [shape = 'u8[512]{0}', space=smem, size = 0x200, scoped, tag = 'input window, operand 0, single buffered']
    #allocation3 [shape = 's32[1]{0}', space=sflag, size = 0x4, scoped, tag = 'scoped memory for wick_forward.1']
    #allocation4 [shape = 's32[1]{0}', space=sflag, size = 0x4, scoped, tag = 'scoped memory for wick_forward.1']
    #allocation5 [shape = 'u8[512]{0}', space=vmem, size = 0x400, scoped, tag = 'output window, operand 0, single buffered']
    %7 = vsyncpa [#allocation4], 0
    %8 = vsyncpa [#allocation3], 0
    // Predicated region
    $region2: #{wick_forward.1} parent=1 // pred_check
      _
    $region3: #{wick_forward.1} parent=1 // pred_check_branch
      %10 = sbr.rel (0) target = $region5
    $region4: #{wick_forward.1} parent=1 // pred_region
      %s12 = ssub.s32 16, 16
      %13 = vsyncadd [#allocation4], %s12
      %s15 = sshll.u32 %s0, 4
      %s16 = int_to_ptr.vmem [resolvable:$true] %s15
      %18 = dma.vmem_to_smem %s16, 16, [#allocation2], [#allocation4]
    $region5: #{wick_forward.1} parent=1 // pred_fallthru
      _
    // Predicated region
    $region6: #{wick_forward.1} parent=1 // pred_check
      _
    $region7: #{wick_forward.1} parent=1 // pred_check_branch
      %20 = sbr.rel (0) target = $region9
    $region8: #{wick_forward.1} parent=1 // pred_region
      _
    $region9: #{wick_forward.1} parent=1 // pred_fallthru
      _
    // Predicated region
    $region10: #{wick_forward.1} parent=1 // pred_check
      _
    $region11: #{wick_forward.1} parent=1 // pred_check_branch
      %22 = sbr.rel (0) target = $region13
    $region12: #{wick_forward.1} parent=1 // pred_region
      %23 = dma.done [#allocation4], 16
    $region13: #{wick_forward.1} parent=1 // pred_fallthru
      _
    %24 = sfence
    %s25 = sld [smem:[#allocation2]]
    %s26 = sld [smem:[#allocation2 + $0x1]]
    %s27 = sld [smem:[#allocation2 + $0x2]]
    %s28 = ssub.f32 0.0, %s27
    %v29 = vld [vmem:[%s1] sm:$0x1]
    %v30 = vstv %s26
    %v31 = vmul.f32 %v30, %v29
    %v32 = vadd.f32 %v31, 1.0
    %v33 = vlog2.pop %v32
    %v34 = vmul.f32 %v33, 0.6931472
    %v35 = vstv %s28
    %v36 = vmul.f32 %v35, %v34
    %v37 = vmul.f32 %v36, 1.442695
    %v38 = vpow.pop %v37
    %v39 = vstv %s25
    %v40 = vmul.f32 %v39, %v38
    %vm41 = vcmask 8192
    %42 = vst.msk [vmem:[#allocation5] sm:$0x1] %vm41, %v40
    // Predicated region
    $region14: #{wick_forward.1} parent=1 // pred_check
      _
    $region15: #{wick_forward.1} parent=1 // pred_check_branch
      %44 = sbr.rel (0) target = $region17
    $region16: #{wick_forward.1} parent=1 // pred_region
      %s46 = ssub.s32 16, 16
      %47 = vsyncadd [#allocation3], %s46
      %s49 = sshll.u32 [#allocation5], 4
      %s50 = int_to_ptr.vmem [resolvable:$true] %s49
      %52 = dma.vmem_to_hbm [thread:$0]  %s50, 16, %s2, [#allocation3]
    $region17: #{wick_forward.1} parent=1 // pred_fallthru
      _
    // Predicated region
    $region18: #{wick_forward.1} parent=1 // pred_check
      _
    $region19: #{wick_forward.1} parent=1 // pred_check_branch
      %54 = sbr.rel (0) target = $region21
    $region20: #{wick_forward.1} parent=1 // pred_region
      %55 = dma.done [#allocation3], 16
    $region21: #{wick_forward.1} parent=1 // pred_fallthru
      _
    %56 = vsyncpa [#allocation3], 1
    %57 = vsyncpa [#allocation4], 1

</llo_original>
